<compile_context>
chip_gen: v7x
topology: tpu7x:2x2x1
jax: 0.10.0
libtpu: 0.0.40
codegen_flags: <defaults>
</compile_context>

<pallas_src>
import functools
import math

import jax
import jax.numpy as jnp
from jax.experimental import pallas as pl
from jax.experimental.pallas import tpu as pltpu

LN_EPS = 1e-5


def _attention_kernel(x_ref, wqkv_ref, bias_ref, wout_ref, *refs,
                      heads, dim_head, exact_softmax):
    if len(refs) == 3:
        out_ref, attn_ref, o_scratch = refs
    else:
        out_ref, o_scratch = refs
        attn_ref = None

    bt, n, d = x_ref.shape
    inner = heads * dim_head
    m = bt * n
    cdt = wqkv_ref.dtype                       # MXU operand (compute) dtype

    # ---- LayerNorm over features (f32 statistics, biased variance); the gamma/beta
    # affine is pre-folded into wqkv/bias by the wrapper. ----
    x = x_ref[...].reshape(m, d).astype(jnp.float32)
    mean = jnp.mean(x, axis=-1, keepdims=True)
    var = jnp.mean((x - mean) ** 2, axis=-1, keepdims=True)
    xn = (x - mean) * jax.lax.rsqrt(var + LN_EPS)

    # ---- fused QKV projection: one (M, D) @ (D, 3*inner) MXU matmul, f32 acc.
    # (q-scale columns + gamma rows folded into wqkv; beta arrives as a bias row.) ----
    qkv = jnp.dot(xn.astype(cdt), wqkv_ref[...],
                  preferred_element_type=jnp.float32)
    qkv = qkv + bias_ref[...].astype(jnp.float32)            # (M, 3*inner) f32

    # ---- per-head attention, batched over the Bt batch elements of this tile. ----
    for h in range(heads):
        q_h = qkv[:, 0 * inner + h * dim_head: 0 * inner + (h + 1) * dim_head]
        k_h = qkv[:, 1 * inner + h * dim_head: 1 * inner + (h + 1) * dim_head]
        v_h = qkv[:, 2 * inner + h * dim_head: 2 * inner + (h + 1) * dim_head]
        q_h = q_h.reshape(bt, n, dim_head).astype(cdt)
        k_h = k_h.reshape(bt, n, dim_head).astype(cdt)
        v_h = v_h.reshape(bt, n, dim_head).astype(cdt)

        sim = jnp.einsum('bid,bjd->bij', q_h, k_h,
                         preferred_element_type=jnp.float32)   # (Bt, N, N)
        smax = jnp.max(sim, axis=-1, keepdims=True)
        p = jnp.exp(sim - smax)
        denom = jnp.sum(p, axis=-1, keepdims=True)
        if exact_softmax:
            attn = p / denom                                    # exact returned probs
        else:
            attn = p * pl.reciprocal(denom, approx=True)        # EUP slot, ~free

        if attn_ref is not None:
            attn_ref[:, h, :, :] = attn.astype(attn_ref.dtype)

        # TODO(synk): dropout with p > 0 would need pltpu.prng_* masking; p=0.0 here.
        o_h = jnp.einsum('bij,bjd->bid', attn.astype(cdt), v_h,
                         preferred_element_type=jnp.float32)    # (Bt, N, dh)
        o_scratch[:, h * dim_head:(h + 1) * dim_head] = (
            o_h.reshape(m, dim_head).astype(cdt))

    # ---- single output projection: (M, inner) @ (inner, D), contraction K = inner ----
    out = jnp.dot(o_scratch[...], wout_ref[...],
                  preferred_element_type=jnp.float32)
    out_ref[...] = out.reshape(bt, n, d).astype(out_ref.dtype)


def _tpu_vmem_capacity_bytes():
    """Physical VMEM per TensorCore; conservative 64 MiB fallback if unqueryable."""
    try:
        return int(pltpu.get_tpu_info().vmem_capacity_bytes)
    except Exception:
        return 64 << 20


def _weight_vmem_bytes(d, heads, dim_head, cdt_item):
    inner = heads * dim_head
    # wqkv + wout + bias row; pipeline inputs are double-buffered by default.
    return 2 * ((d * 3 * inner + inner * d) * cdt_item + 3 * inner * 4)


def _step_vmem_bytes(bt, n, d, heads, dim_head, x_item, cdt_item, attn_item,
                     return_attn):
    """Rough per-grid-step VMEM estimate (pipeline blocks + f32 intermediates)."""
    inner = heads * dim_head
    m = bt * n
    io = 2 * 2 * m * d * x_item                        # x + out tiles, double-buffered
    if return_attn:
        io += 2 * bt * heads * n * n * attn_item       # attn tile, double-buffered
    tmp = m * d * 4 + m * 3 * inner * 4                # xn + qkv (f32)
    tmp += 4 * bt * n * n * 4                          # sim / p / attn temporaries
    tmp += m * inner * cdt_item                        # o scratch
    return io + tmp


def _pick_batch_tile(batch, n, d, heads, dim_head, x_item, cdt_item, attn_item,
                     return_attn, vmem_cap):
    """Generation-aware batch-tile choice.

    v5e/v6e (1 TensorCore, 128 MiB VMEM): largest fitting tile (fewer serial grid
    steps, bigger DMAs, better MXU fill). 64 MiB-VMEM chips (v7x, 2 TCs): keep >=2
    (preferably even) parallel grid steps with >=256 rows per step when possible.
    """
    multi_core = vmem_cap <= (64 << 20)
    budget = int(vmem_cap * 0.55) - _weight_vmem_bytes(d, heads, dim_head, cdt_item)
    budget = max(budget, 1)

    def fits(bt):
        return (bt * n <= 4096 and
                _step_vmem_bytes(bt, n, d, heads, dim_head, x_item, cdt_item,
                                 attn_item, return_attn) <= budget)

    candidates = [bt for bt in range(1, batch + 1) if fits(bt)]
    if not candidates:
        return 1
    if multi_core:
        good = [bt for bt in candidates
                if bt * n >= 256 and math.ceil(batch / bt) >= 2]
        if good:
            even = [bt for bt in good if math.ceil(batch / bt) % 2 == 0]
            return min(even) if even else min(good)
        return max(candidates)
    return max(candidates)


def attention_forward(x, gamma, beta, w_qkv, w_out, *, heads, dim_head,
                      batch_tile=None, return_attn=True, attn_dtype=None,
                      compute_dtype=None):
    """FT-Transformer Attention forward.

    x: (B, N, D); gamma/beta: (D,); w_qkv: (D, 3*H*dh); w_out: (H*dh, D).
    Returns (out, attn) or just out when return_attn=False.
    compute_dtype: optional MXU operand dtype (e.g. jnp.bfloat16, f32 accumulation);
    defaults to x.dtype so f32 inputs match the f32 reference.
    """
    B, N, D = x.shape
    inner = heads * dim_head
    assert w_qkv.shape == (D, 3 * inner)
    assert w_out.shape == (inner, D)

    cdt = jnp.dtype(compute_dtype) if compute_dtype is not None else jnp.dtype(x.dtype)
    adt = jnp.dtype(attn_dtype) if attn_dtype is not None else jnp.dtype(x.dtype)

    # Fold the 1/sqrt(dh) query scale (columns) and the LayerNorm affine (gamma rows,
    # beta -> bias row) into the QKV projection. Cheap static work; constant-folds
    # under jit when weights are static (hoist/cache upstream if they are traced).
    scale = dim_head ** -0.5
    col_scale = jnp.concatenate([jnp.full((inner,), scale, w_qkv.dtype),
                                 jnp.ones((2 * inner,), w_qkv.dtype)])
    w_scaled = w_qkv * col_scale[None, :]
    qkv_bias = (beta @ w_scaled).reshape(1, 3 * inner).astype(jnp.float32)
    w_fused = (gamma[:, None] * w_scaled).astype(cdt)
    w_out_c = w_out.astype(cdt)

    x_item = jnp.dtype(x.dtype).itemsize
    vmem_cap = _tpu_vmem_capacity_bytes()

    Bt = batch_tile if batch_tile is not None else _pick_batch_tile(
        B, N, D, heads, dim_head, x_item, cdt.itemsize, adt.itemsize,
        return_attn, vmem_cap)
    Bt = max(1, min(int(Bt), B))

    # Pad the batch up to a multiple of the tile; padded rows are sliced off below.
    num_steps = math.ceil(B / Bt)
    B_pad = num_steps * Bt
    x_in = x if B_pad == B else jnp.pad(x, ((0, B_pad - B), (0, 0), (0, 0)))

    kernel = functools.partial(_attention_kernel, heads=heads, dim_head=dim_head,
                               exact_softmax=return_attn)

    out_shapes = [jax.ShapeDtypeStruct((B_pad, N, D), x.dtype)]
    out_specs = [pl.BlockSpec((Bt, N, D), lambda b: (b, 0, 0))]
    if return_attn:
        out_shapes.append(jax.ShapeDtypeStruct((B_pad, heads, N, N), adt))
        out_specs.append(pl.BlockSpec((Bt, heads, N, N), lambda b: (b, 0, 0, 0)))

    grid_spec = pltpu.PrefetchScalarGridSpec(
        num_scalar_prefetch=0,
        grid=(num_steps,),
        in_specs=[
            pl.BlockSpec((Bt, N, D), lambda b: (b, 0, 0)),      # x batch tile
            pl.BlockSpec((D, 3 * inner), lambda b: (0, 0)),     # fused QKV weight
            pl.BlockSpec((1, 3 * inner), lambda b: (0, 0)),     # fused QKV bias row
            pl.BlockSpec((inner, D), lambda b: (0, 0)),         # output projection
        ],
        out_specs=out_specs,
        scratch_shapes=[pltpu.VMEM((Bt * N, inner), cdt)],      # per-head outputs
    )

    # VMEM budget: what this step needs (with margin), clamped below the physical
    # per-core capacity minus headroom (matters most on 64 MiB v7x cores).
    need = (_step_vmem_bytes(Bt, N, D, heads, dim_head, x_item, cdt.itemsize,
                             adt.itemsize, return_attn)
            + _weight_vmem_bytes(D, heads, dim_head, cdt.itemsize))
    vmem_limit = int(min(max(32 << 20, int(1.4 * need)), vmem_cap - (12 << 20)))
    vmem_limit = max(vmem_limit, 16 << 20)

    results = pl.pallas_call(
        kernel,
        out_shape=tuple(out_shapes),
        grid_spec=grid_spec,
        compiler_params=pltpu.CompilerParams(
            dimension_semantics=("parallel",),
            vmem_limit_bytes=vmem_limit),
    )(x_in, w_fused, qkv_bias, w_out_c)

    if return_attn:
        out, attn = results
        if B_pad != B:
            out, attn = out[:B], attn[:B]
        return out, attn
    (out,) = results
    return out[:B] if B_pad != B else out


def _reference(x, gamma, beta, w_qkv, w_out, *, heads, dim_head):
    B, N, D = x.shape
    inner = heads * dim_head
    scale = dim_head ** -0.5
    mean = jnp.mean(x, axis=-1, keepdims=True)
    var = jnp.mean((x - mean) ** 2, axis=-1, keepdims=True)
    xn = (x - mean) * jax.lax.rsqrt(var + LN_EPS) * gamma + beta
    qkv = xn @ w_qkv
    q, k, v = jnp.split(qkv, 3, axis=-1)

    def to_heads(t):
        return t.reshape(B, N, heads, dim_head).transpose(0, 2, 1, 3)

    q, k, v = map(to_heads, (q, k, v))
    sim = jnp.einsum('bhid,bhjd->bhij', q * scale, k)
    attn = jax.nn.softmax(sim, axis=-1)
    o = jnp.einsum('bhij,bhjd->bhid', attn, v)
    o = o.transpose(0, 2, 1, 3).reshape(B, N, inner)
    return o @ w_out, attn


if __name__ == "__main__":
    # Small, module-consistent shapes.
    B, N, D = 2, 8, 32
    heads, dim_head = 2, 16
    inner = heads * dim_head

    key = jax.random.PRNGKey(0)
    kx, kq, ko = jax.random.split(key, 3)

    x = jax.random.normal(kx, (B, N, D), dtype=jnp.float32)
    gamma = jnp.ones((D,), jnp.float32)
    beta = jnp.zeros((D,), jnp.float32)
    w_qkv = jax.random.normal(kq, (D, 3 * inner), jnp.float32) * (D ** -0.5)
    w_out = jax.random.normal(ko, (inner, D), jnp.float32) * (inner ** -0.5)

    out, attn = attention_forward(x, gamma, beta, w_qkv, w_out,
                                  heads=heads, dim_head=dim_head)
    out = jax.block_until_ready(out)
    attn = jax.block_until_ready(attn)

    ref_out, ref_attn = _reference(x, gamma, beta, w_qkv, w_out,
                                   heads=heads, dim_head=dim_head)
    assert out.shape == (B, N, D) and attn.shape == (B, heads, N, N)
    # f32 compute + exact softmax divide for the returned attn -> tight tolerance.
    assert jnp.allclose(out, ref_out, atol=1e-3, rtol=1e-3), float(
        jnp.max(jnp.abs(out - ref_out)))
    assert jnp.allclose(attn, ref_attn, atol=1e-3, rtol=1e-3), float(
        jnp.max(jnp.abs(attn - ref_attn)))

    print("KERNEL_OK")
</pallas_src>

<mosaic_0001>
module attributes {stable_mosaic.version = 11 : i64} {
  func.func @_attention_kernel(%arg0: i32, %arg1: memref<2x8x32xf32, #tpu.memory_space<vmem>>, %arg2: memref<32x96xf32, #tpu.memory_space<vmem>>, %arg3: memref<1x96xf32, #tpu.memory_space<vmem>>, %arg4: memref<32x32xf32, #tpu.memory_space<vmem>>, %arg5: memref<2x8x32xf32, #tpu.memory_space<vmem>>, %arg6: memref<2x2x8x8xf32, #tpu.memory_space<vmem>>, %arg7: memref<16x32xf32, #tpu.memory_space<vmem>>) attributes {dimension_semantics = [#tpu.dimension_semantics<parallel>], iteration_bounds = array<i64: 1>, scalar_prefetch = 0 : i64, scratch_operands = 1 : i64, tpu.core_type = #tpu.core_type<tc>, window_params = [{transform_indices = @transform_0, window_bounds = array<i64: 2, 8, 32>}, {pipeline_mode = #tpu.pipeline_mode<synchronous>, transform_indices = @transform_1, window_bounds = array<i64: 32, 96>}, {pipeline_mode = #tpu.pipeline_mode<synchronous>, transform_indices = @transform_2, window_bounds = array<i64: 1, 96>}, {pipeline_mode = #tpu.pipeline_mode<synchronous>, transform_indices = @transform_3, window_bounds = array<i64: 32, 32>}, {transform_indices = @transform_4, window_bounds = array<i64: 2, 8, 32>}, {transform_indices = @transform_5, window_bounds = array<i64: 2, 2, 8, 8>}]} {
    %c0 = arith.constant 0 : index
    %c0_0 = arith.constant 0 : index
    %c0_1 = arith.constant 0 : index
    %0 = vector.load %arg1[%c0, %c0_0, %c0_1] : memref<2x8x32xf32, #tpu.memory_space<vmem>>, vector<2x8x32xf32>
    %1 = vector.shape_cast %0 : vector<2x8x32xf32> to vector<16x32xf32>
    %cst = arith.constant dense<0.000000e+00> : vector<16xf32>
    %2 = vector.multi_reduction <add>, %1, %cst [1] : vector<16x32xf32> to vector<16xf32>
    %3 = vector.shape_cast %2 : vector<16xf32> to vector<16x1xf32>
    %cst_2 = arith.constant 3.200000e+01 : f32
    %4 = vector.broadcast %cst_2 : f32 to vector<16x1xf32>
    %5 = arith.divf %3, %4 : vector<16x1xf32>
    %6 = vector.broadcast %5 : vector<16x1xf32> to vector<16x32xf32>
    %7 = arith.subf %1, %6 : vector<16x32xf32>
    %8 = arith.mulf %7, %7 : vector<16x32xf32>
    %cst_3 = arith.constant dense<0.000000e+00> : vector<16xf32>
    %9 = vector.multi_reduction <add>, %8, %cst_3 [1] : vector<16x32xf32> to vector<16xf32>
    %10 = vector.shape_cast %9 : vector<16xf32> to vector<16x1xf32>
    %cst_4 = arith.constant 3.200000e+01 : f32
    %11 = vector.broadcast %cst_4 : f32 to vector<16x1xf32>
    %12 = arith.divf %10, %11 : vector<16x1xf32>
    %13 = vector.broadcast %5 : vector<16x1xf32> to vector<16x32xf32>
    %14 = arith.subf %1, %13 : vector<16x32xf32>
    %cst_5 = arith.constant 9.99999974E-6 : f32
    %15 = vector.broadcast %cst_5 : f32 to vector<16x1xf32>
    %16 = arith.addf %12, %15 : vector<16x1xf32>
    %17 = math.rsqrt %16 : vector<16x1xf32>
    %18 = vector.broadcast %17 : vector<16x1xf32> to vector<16x32xf32>
    %19 = arith.mulf %14, %18 : vector<16x32xf32>
    %c0_6 = arith.constant 0 : index
    %c0_7 = arith.constant 0 : index
    %20 = vector.load %arg2[%c0_6, %c0_7] : memref<32x96xf32, #tpu.memory_space<vmem>>, vector<32x96xf32>
    %cst_8 = arith.constant dense<0.000000e+00> : vector<16x96xf32>
    %21 = tpu.matmul %19, %20, %cst_8 {dimension_numbers = #tpu.dot_dimension_numbers<[1], [0], [0], [1], [0, 0, 1, 1], [], []>} : vector<16x32xf32>, vector<32x96xf32>, vector<16x96xf32> -> vector<16x96xf32>
    %c0_9 = arith.constant 0 : index
    %c0_10 = arith.constant 0 : index
    %22 = vector.load %arg3[%c0_9, %c0_10] : memref<1x96xf32, #tpu.memory_space<vmem>>, vector<1x96xf32>
    %23 = vector.broadcast %22 : vector<1x96xf32> to vector<16x96xf32>
    %24 = arith.addf %21, %23 : vector<16x96xf32>
    %25 = vector.extract_strided_slice %24 {offsets = [0, 0], sizes = [16, 16], strides = [1, 1]} : vector<16x96xf32> to vector<16x16xf32>
    %26 = vector.extract_strided_slice %24 {offsets = [0, 32], sizes = [16, 16], strides = [1, 1]} : vector<16x96xf32> to vector<16x16xf32>
    %27 = vector.extract_strided_slice %24 {offsets = [0, 64], sizes = [16, 16], strides = [1, 1]} : vector<16x96xf32> to vector<16x16xf32>
    %28 = vector.shape_cast %25 : vector<16x16xf32> to vector<2x8x16xf32>
    %29 = vector.shape_cast %26 : vector<16x16xf32> to vector<2x8x16xf32>
    %30 = vector.shape_cast %27 : vector<16x16xf32> to vector<2x8x16xf32>
    "tpu.trace_start"() <{level = 10 : i32, message = "bid,bjd->bij"}> : () -> ()
    %cst_11 = arith.constant dense<0.000000e+00> : vector<2x8x8xf32>
    %31 = tpu.matmul %28, %29, %cst_11 {dimension_numbers = #tpu.dot_dimension_numbers<[2], [2], [1], [1], [0, 0, 0, 1, 1, 1], [0], [0]>} : vector<2x8x16xf32>, vector<2x8x16xf32>, vector<2x8x8xf32> -> vector<2x8x8xf32>
    "tpu.trace_stop"() : () -> ()
    %cst_12 = arith.constant dense<0xFF800000> : vector<2x8xf32>
    %32 = vector.multi_reduction <maximumf>, %31, %cst_12 [2] : vector<2x8x8xf32> to vector<2x8xf32>
    %33 = vector.shape_cast %32 : vector<2x8xf32> to vector<2x8x1xf32>
    %34 = vector.broadcast %33 : vector<2x8x1xf32> to vector<2x8x8xf32>
    %35 = arith.subf %31, %34 : vector<2x8x8xf32>
    %36 = math.exp %35 : vector<2x8x8xf32>
    %cst_13 = arith.constant dense<0.000000e+00> : vector<2x8xf32>
    %37 = vector.multi_reduction <add>, %36, %cst_13 [2] : vector<2x8x8xf32> to vector<2x8xf32>
    %38 = vector.shape_cast %37 : vector<2x8xf32> to vector<2x8x1xf32>
    %39 = vector.broadcast %38 : vector<2x8x1xf32> to vector<2x8x8xf32>
    %40 = arith.divf %36, %39 : vector<2x8x8xf32>
    %c0_14 = arith.constant 0 : index
    %c0_15 = arith.constant 0 : index
    %c0_16 = arith.constant 0 : index
    %c0_17 = arith.constant 0 : index
    %41 = vector.load %arg6[%c0_14, %c0_15, %c0_16, %c0_17] : memref<2x2x8x8xf32, #tpu.memory_space<vmem>>, vector<2x1x8x8xf32>
    %42 = vector.shape_cast %41 : vector<2x1x8x8xf32> to vector<2x8x8xf32>
    %43 = vector.shape_cast %40 : vector<2x8x8xf32> to vector<2x1x8x8xf32>
    tpu.vector_store %arg6[%c0_14, %c0_15, %c0_16, %c0_17], %43 {strides = array<i32>} : memref<2x2x8x8xf32, #tpu.memory_space<vmem>>, vector<2x1x8x8xf32>,
    "tpu.trace_start"() <{level = 10 : i32, message = "bij,bjd->bid"}> : () -> ()
    %cst_18 = arith.constant dense<0.000000e+00> : vector<2x8x16xf32>
    %44 = tpu.matmul %40, %30, %cst_18 {dimension_numbers = #tpu.dot_dimension_numbers<[2], [1], [1], [2], [0, 0, 0, 1, 1, 2], [0], [0]>} : vector<2x8x8xf32>, vector<2x8x16xf32>, vector<2x8x16xf32> -> vector<2x8x16xf32>
    "tpu.trace_stop"() : () -> ()
    %45 = vector.shape_cast %44 : vector<2x8x16xf32> to vector<16x16xf32>
    %c0_19 = arith.constant 0 : index
    %c0_20 = arith.constant 0 : index
    %46 = vector.load %arg7[%c0_19, %c0_20] : memref<16x32xf32, #tpu.memory_space<vmem>>, vector<16x16xf32>
    tpu.vector_store %arg7[%c0_19, %c0_20], %45 {strides = array<i32>} : memref<16x32xf32, #tpu.memory_space<vmem>>, vector<16x16xf32>,
    %47 = vector.extract_strided_slice %24 {offsets = [0, 16], sizes = [16, 16], strides = [1, 1]} : vector<16x96xf32> to vector<16x16xf32>
    %48 = vector.extract_strided_slice %24 {offsets = [0, 48], sizes = [16, 16], strides = [1, 1]} : vector<16x96xf32> to vector<16x16xf32>
    %49 = vector.extract_strided_slice %24 {offsets = [0, 80], sizes = [16, 16], strides = [1, 1]} : vector<16x96xf32> to vector<16x16xf32>
    %50 = vector.shape_cast %47 : vector<16x16xf32> to vector<2x8x16xf32>
    %51 = vector.shape_cast %48 : vector<16x16xf32> to vector<2x8x16xf32>
    %52 = vector.shape_cast %49 : vector<16x16xf32> to vector<2x8x16xf32>
    "tpu.trace_start"() <{level = 10 : i32, message = "bid,bjd->bij"}> : () -> ()
    %cst_21 = arith.constant dense<0.000000e+00> : vector<2x8x8xf32>
    %53 = tpu.matmul %50, %51, %cst_21 {dimension_numbers = #tpu.dot_dimension_numbers<[2], [2], [1], [1], [0, 0, 0, 1, 1, 1], [0], [0]>} : vector<2x8x16xf32>, vector<2x8x16xf32>, vector<2x8x8xf32> -> vector<2x8x8xf32>
    "tpu.trace_stop"() : () -> ()
    %cst_22 = arith.constant dense<0xFF800000> : vector<2x8xf32>
    %54 = vector.multi_reduction <maximumf>, %53, %cst_22 [2] : vector<2x8x8xf32> to vector<2x8xf32>
    %55 = vector.shape_cast %54 : vector<2x8xf32> to vector<2x8x1xf32>
    %56 = vector.broadcast %55 : vector<2x8x1xf32> to vector<2x8x8xf32>
    %57 = arith.subf %53, %56 : vector<2x8x8xf32>
    %58 = math.exp %57 : vector<2x8x8xf32>
    %cst_23 = arith.constant dense<0.000000e+00> : vector<2x8xf32>
    %59 = vector.multi_reduction <add>, %58, %cst_23 [2] : vector<2x8x8xf32> to vector<2x8xf32>
    %60 = vector.shape_cast %59 : vector<2x8xf32> to vector<2x8x1xf32>
    %61 = vector.broadcast %60 : vector<2x8x1xf32> to vector<2x8x8xf32>
    %62 = arith.divf %58, %61 : vector<2x8x8xf32>
    %c0_24 = arith.constant 0 : index
    %c1 = arith.constant 1 : index
    %c0_25 = arith.constant 0 : index
    %c0_26 = arith.constant 0 : index
    %63 = vector.load %arg6[%c0_24, %c1, %c0_25, %c0_26] : memref<2x2x8x8xf32, #tpu.memory_space<vmem>>, vector<2x1x8x8xf32>
    %64 = vector.shape_cast %63 : vector<2x1x8x8xf32> to vector<2x8x8xf32>
    %65 = vector.shape_cast %62 : vector<2x8x8xf32> to vector<2x1x8x8xf32>
    tpu.vector_store %arg6[%c0_24, %c1, %c0_25, %c0_26], %65 {strides = array<i32>} : memref<2x2x8x8xf32, #tpu.memory_space<vmem>>, vector<2x1x8x8xf32>,
    "tpu.trace_start"() <{level = 10 : i32, message = "bij,bjd->bid"}> : () -> ()
    %cst_27 = arith.constant dense<0.000000e+00> : vector<2x8x16xf32>
    %66 = tpu.matmul %62, %52, %cst_27 {dimension_numbers = #tpu.dot_dimension_numbers<[2], [1], [1], [2], [0, 0, 0, 1, 1, 2], [0], [0]>} : vector<2x8x8xf32>, vector<2x8x16xf32>, vector<2x8x16xf32> -> vector<2x8x16xf32>
    "tpu.trace_stop"() : () -> ()
    %67 = vector.shape_cast %66 : vector<2x8x16xf32> to vector<16x16xf32>
    %c0_28 = arith.constant 0 : index
    %c16 = arith.constant 16 : index
    %68 = vector.load %arg7[%c0_28, %c16] : memref<16x32xf32, #tpu.memory_space<vmem>>, vector<16x16xf32>
    tpu.vector_store %arg7[%c0_28, %c16], %67 {strides = array<i32>} : memref<16x32xf32, #tpu.memory_space<vmem>>, vector<16x16xf32>,
    %c0_29 = arith.constant 0 : index
    %c0_30 = arith.constant 0 : index
    %69 = vector.load %arg7[%c0_29, %c0_30] : memref<16x32xf32, #tpu.memory_space<vmem>>, vector<16x32xf32>
    %c0_31 = arith.constant 0 : index
    %c0_32 = arith.constant 0 : index
    %70 = vector.load %arg4[%c0_31, %c0_32] : memref<32x32xf32, #tpu.memory_space<vmem>>, vector<32x32xf32>
    %cst_33 = arith.constant dense<0.000000e+00> : vector<16x32xf32>
    %71 = tpu.matmul %69, %70, %cst_33 {dimension_numbers = #tpu.dot_dimension_numbers<[1], [0], [0], [1], [0, 0, 1, 1], [], []>} : vector<16x32xf32>, vector<32x32xf32>, vector<16x32xf32> -> vector<16x32xf32>
    %72 = vector.shape_cast %71 : vector<16x32xf32> to vector<2x8x32xf32>
    %c0_34 = arith.constant 0 : index
    %c0_35 = arith.constant 0 : index
    %c0_36 = arith.constant 0 : index
    %73 = vector.load %arg5[%c0_34, %c0_35, %c0_36] : memref<2x8x32xf32, #tpu.memory_space<vmem>>, vector<2x8x32xf32>
    tpu.vector_store %arg5[%c0_34, %c0_35, %c0_36], %72 {strides = array<i32>} : memref<2x8x32xf32, #tpu.memory_space<vmem>>, vector<2x8x32xf32>,
    return
  }
  func.func @transform_0(%arg0: i32) -> (i32, i32, i32) {
    %c0_i32 = arith.constant 0 : i32
    %c0_i32_0 = arith.constant 0 : i32
    %c0_i32_1 = arith.constant 0 : i32
    return %arg0, %c0_i32, %c0_i32_0 : i32, i32, i32
  }
  func.func @transform_1(%arg0: i32) -> (i32, i32) {
    %c0_i32 = arith.constant 0 : i32
    %c0_i32_0 = arith.constant 0 : i32
    %c0_i32_1 = arith.constant 0 : i32
    return %c0_i32, %c0_i32_0 : i32, i32
  }
  func.func @transform_2(%arg0: i32) -> (i32, i32) {
    %c0_i32 = arith.constant 0 : i32
    %c0_i32_0 = arith.constant 0 : i32
    %c0_i32_1 = arith.constant 0 : i32
    return %c0_i32, %c0_i32_0 : i32, i32
  }
  func.func @transform_3(%arg0: i32) -> (i32, i32) {
    %c0_i32 = arith.constant 0 : i32
    %c0_i32_0 = arith.constant 0 : i32
    %c0_i32_1 = arith.constant 0 : i32
    return %c0_i32, %c0_i32_0 : i32, i32
  }
  func.func @transform_4(%arg0: i32) -> (i32, i32, i32) {
    %c0_i32 = arith.constant 0 : i32
    %c0_i32_0 = arith.constant 0 : i32
    %c0_i32_1 = arith.constant 0 : i32
    return %arg0, %c0_i32, %c0_i32_0 : i32, i32, i32
  }
  func.func @transform_5(%arg0: i32) -> (i32, i32, i32, i32) {
    %c0_i32 = arith.constant 0 : i32
    %c0_i32_0 = arith.constant 0 : i32
    %c0_i32_1 = arith.constant 0 : i32
    %c0_i32_2 = arith.constant 0 : i32
    return %arg0, %c0_i32, %c0_i32_0, %c0_i32_1 : i32, i32, i32, i32
  }
}

</mosaic_0001>

<llo_original>
// kernel: tpu_custom_call.1
$region0: #{tpu_custom_call.1}
  #allocation0 [shape = 'u32[]', space=smem, size = 0x4, offset = 0x4, fixed_abs, tag = 'smem constant byte address 0x4 - core index']
  #allocation1 [shape = 'u32[144,128]{1,0:T(1,128)}', space=vmem, size = 0x12000, scoped, tag = 'internal scratch']
  #allocation2 [shape = 'f32[16,32]{1,0:T(8,128)}', space=vmem, size = 0x2000, scoped, tag = 'scratch operand']
  %s0 = inlined_call_operand.hbm [shape: f32[2,8,32], index: 0, kind: input, shape index: {}]
  %s1 = inlined_call_operand.hbm [shape: f32[32,96], index: 1, kind: input, shape index: {}]
  %s2 = inlined_call_operand.vmem [shape: f32[1,96], index: 2, kind: input, shape index: {}]
  %s3 = inlined_call_operand.hbm [shape: f32[32,32], index: 3, kind: input, shape index: {}]
  %s4 = inlined_call_operand.hbm [shape: f32[2,8,32], index: 4, kind: output, shape index: {0}]
  %s5 = inlined_call_operand.hbm [shape: f32[2,2,8,8], index: 5, kind: output, shape index: {1}]
  %6 = xla_tuple %s4, %s5
  %s7 = sld [smem:[#allocation0]]
  $region46: #{tpu_custom_call.1} parent=0
    _
  %s9 = ssub.s32 1, %s7
  %s10 = scalar_select 0, %s9, %s7
  $region1: #{tpu_custom_call.1} parent=0
    #allocation3 [shape = 'u8[8192]{0}', space=vmem, size = 0x2000, scoped, tag = 'input window, operand 0, single buffered']
    #allocation4 [shape = 's32[1]{0}', space=sflag, size = 0x4, scoped, tag = 'scoped memory for tpu_custom_call.1']
    #allocation5 [shape = 's32[1]{0}', space=sflag, size = 0x4, scoped, tag = 'scoped memory for tpu_custom_call.1']
    #allocation6 [shape = 'u8[16384]{0}', space=vmem, size = 0x4000, scoped, tag = 'input window, operand 1, single buffered']
    #allocation7 [shape = 's32[1]{0}', space=sflag, size = 0x4, scoped, tag = 'scoped memory for tpu_custom_call.1']
    #allocation8 [shape = 'u8[16384]{0}', space=vmem, size = 0x4000, scoped, tag = 'input window, operand 3, single buffered']
    #allocation9 [shape = 'u8[8192]{0}', space=vmem, size = 0x2000, scoped, tag = 'output window, operand 0, single buffered']
    #allocation10 [shape = 'u8[16384]{0}', space=vmem, size = 0x4000, scoped, tag = 'output window, operand 1, single buffered']
    #allocation11 [shape = 's32[1]{0}', space=sflag, size = 0x4, scoped, tag = 'scoped memory for tpu_custom_call.1']
    %11 = vsyncpa [#allocation4], 0
    %12 = vsyncpa [#allocation7], 0
    %13 = vsyncpa [#allocation5], 0
    %14 = vsyncpa [#allocation11], 0
    // Predicated region
    $region2: #{tpu_custom_call.1} parent=1 // pred_check
      _
    $region3: #{tpu_custom_call.1} parent=1 // pred_check_branch
      %16 = sbr.rel (0) target = $region5
    $region4: #{tpu_custom_call.1} parent=1 // pred_region
      %s18 = ssub.s32 256, 256
      %19 = vsyncadd [#allocation4], %s18
      %s20 = sshll.u32 [#allocation3], 4
      %s21 = int_to_ptr.vmem [resolvable:$true] %s20
      %26 = dma.hbm_to_vmem [thread:$0]  %s0, 256, %s21, [#allocation4], 128, 128, 8
    $region5: #{tpu_custom_call.1} parent=1 // pred_fallthru
      _
    // Predicated region
    $region6: #{tpu_custom_call.1} parent=1 // pred_check
      _
    $region7: #{tpu_custom_call.1} parent=1 // pred_check_branch
      %28 = sbr.rel (0) target = $region9
    $region8: #{tpu_custom_call.1} parent=1 // pred_region
      %s30 = ssub.s32 512, 512
      %31 = vsyncadd [#allocation7], %s30
      %s32 = sshll.u32 [#allocation6], 4
      %s33 = int_to_ptr.vmem [resolvable:$true] %s32
      %38 = dma.hbm_to_vmem [thread:$0]  %s1, 512, %s33, [#allocation7], 128, 128, 8
    $region9: #{tpu_custom_call.1} parent=1 // pred_fallthru
      _
    // Predicated region
    $region10: #{tpu_custom_call.1} parent=1 // pred_check
      _
    $region11: #{tpu_custom_call.1} parent=1 // pred_check_branch
      %40 = sbr.rel (0) target = $region13
    $region12: #{tpu_custom_call.1} parent=1 // pred_region
      _
    $region13: #{tpu_custom_call.1} parent=1 // pred_fallthru
      _
    // Predicated region
    $region14: #{tpu_custom_call.1} parent=1 // pred_check
      _
    $region15: #{tpu_custom_call.1} parent=1 // pred_check_branch
      %42 = sbr.rel (0) target = $region17
    $region16: #{tpu_custom_call.1} parent=1 // pred_region
      %s44 = ssub.s32 512, 512
      %45 = vsyncadd [#allocation7], %s44
      %s46 = sshll.u32 [#allocation8], 4
      %s47 = int_to_ptr.vmem [resolvable:$true] %s46
      %52 = dma.hbm_to_vmem [thread:$0]  %s3, 512, %s47, [#allocation7], 128, 128, 8
    $region17: #{tpu_custom_call.1} parent=1 // pred_fallthru
      _
    // Predicated region
    $region18: #{tpu_custom_call.1} parent=1 // pred_check
      _
    $region19: #{tpu_custom_call.1} parent=1 // pred_check_branch
      %54 = sbr.rel (0) target = $region21
    $region20: #{tpu_custom_call.1} parent=1 // pred_region
      %55 = dma.done [#allocation4], 256
    $region21: #{tpu_custom_call.1} parent=1 // pred_fallthru
      _
    // Predicated region
    $region22: #{tpu_custom_call.1} parent=1 // pred_check
      _
    $region23: #{tpu_custom_call.1} parent=1 // pred_check_branch
      %57 = sbr.rel (0) target = $region25
    $region24: #{tpu_custom_call.1} parent=1 // pred_region
      %58 = dma.done [#allocation7], 512
    $region25: #{tpu_custom_call.1} parent=1 // pred_fallthru
      _
    // Predicated region
    $region26: #{tpu_custom_call.1} parent=1 // pred_check
      _
    $region27: #{tpu_custom_call.1} parent=1 // pred_check_branch
      %60 = sbr.rel (0) target = $region29
    $region28: #{tpu_custom_call.1} parent=1 // pred_region
      %61 = dma.done [#allocation7], 512
    $region29: #{tpu_custom_call.1} parent=1 // pred_fallthru
      _
    %v62 = vld [vmem:[#allocation3] sm:$0xff]
    %v63 = vld [vmem:[#allocation3 + $0x8] sm:$0xff]
    %vm64 = vcmask 261120
    %v65 = vsel %vm64, %v62, 0.0
    %66 = vadd.xlane.f32.xlu0 %v65
    %v67 = vpop.xlane.xlu0 %66
    %v68 = vsel %vm64, %v63, 0.0
    %69 = vadd.xlane.f32.xlu0 %v68
    %v70 = vpop.xlane.xlu0 %69
    %v71 = vrcp.pop 32.0
    %v72 = vmul.f32 %v67, %v71
    %v73 = vmul.f32 %v70, %v71
    %v74 = vsub.f32 %v62, %v72
    %v75 = vsub.f32 %v63, %v73
    %v76 = vmul.f32 %v74, %v74
    %v77 = vmul.f32 %v75, %v75
    %v78 = vsel %vm64, %v76, 0.0
    %79 = vadd.xlane.f32.xlu0 %v78
    %v80 = vpop.xlane.xlu0 %79
    %v81 = vsel %vm64, %v77, 0.0
    %82 = vadd.xlane.f32.xlu0 %v81
    %v83 = vpop.xlane.xlu0 %82
    %v84 = vmul.f32 %v80, %v71
    %v85 = vmul.f32 %v83, %v71
    %v86 = vadd.f32 %v84, 1e-05
    %v87 = vadd.f32 %v85, 1e-05
    %v88 = vrsqrt.pop %v86
    %v89 = vrsqrt.pop %v87
    %v90 = vmul.f32 %v74, %v88
    %v91 = vmul.f32 %v75, %v89
    %v92 = vld [vmem:[#allocation6] sm:$0xff]
    %v93 = vld [vmem:[#allocation6 + $0x8] sm:$0xff]
    %v94 = vld [vmem:[#allocation6 + $0x10] sm:$0xff]
    %v95 = vld [vmem:[#allocation6 + $0x18] sm:$0xff]
    %v96 = vld [vmem:[%s2] sm:$0x1]
    %v98 = vlaneseq
    %v99 = vshrl.u32 %v98, 7
    %v100 = vsub.s32 0, %v99
    %v101 = vrot.slane %v96, %v100
    %v104 = vsel %vm64, %v90, 0
    %v107 = vsel %vm64, %v91, 0
    %109 = vmatprep.subr.mxu0 0.0
    %110 = vmatpush1.msra.mxu0 %v92
    %111 = vmatprep.subr.mxu0 0.0
    %112 = vmatpush1.msra.mxu0 %v93
    %113 = vmatprep.subr.mxu0 0.0
    %114 = vmatpush1.msra.mxu0 %v94
    %115 = vmatprep.subr.mxu0 0.0
    %116 = vmatpush1.msra.mxu0 %v95
    %117 = vmatprep.subr.mxu0 0.0
    %118 = vmatpush1.msra.mxu0 0.0
    %119 = vmatprep.subr.mxu0 0.0
    %120 = vmatpush1.msra.mxu0 0.0
    %121 = vmatprep.subr.mxu0 0.0
    %122 = vmatpush1.msra.mxu0 0.0
    %123 = vmatprep.subr.mxu0 0.0
    %124 = vmatpush1.msra.mxu0 0.0
    %125 = vmatprep.subr.mxu0 0.0
    %126 = vmatpush1.msra.mxu0 0.0
    %127 = vmatprep.subr.mxu0 0.0
    %128 = vmatpush1.msra.mxu0 0.0
    %129 = vmatprep.subr.mxu0 0.0
    %130 = vmatpush1.msra.mxu0 0.0
    %131 = vmatprep.subr.mxu0 0.0
    %132 = vmatpush1.msra.mxu0 0.0
    %133 = vmatprep.subr.mxu0 0.0
    %134 = vmatpush1.msra.mxu0 0.0
    %135 = vmatprep.subr.mxu0 0.0
    %136 = vmatpush1.msra.mxu0 0.0
    %137 = vmatprep.subr.mxu0 0.0
    %138 = vmatpush1.msra.mxu0 0.0
    %139 = vmatprep.subr.mxu0 0.0
    %140 = vmatpush1.msra.mxu0 0.0
    %141 = vmatprep.subr.mxu0 0.0
    %142 = vmatpush1.msra.mxu0 0.0
    %143 = vmatprep.subr.mxu0 0.0
    %144 = vmatpush1.msra.mxu0 0.0
    %145 = vmatprep.subr.mxu0 0.0
    %146 = vmatpush1.msra.mxu0 0.0
    %147 = vmatprep.subr.mxu0 0.0
    %148 = vmatpush1.msra.mxu0 0.0
    %149 = vmatprep.subr.mxu0 0.0
    %150 = vmatpush1.msra.mxu0 0.0
    %151 = vmatprep.subr.mxu0 0.0
    %152 = vmatpush1.msra.mxu0 0.0
    %153 = vmatprep.subr.mxu0 0.0
    %154 = vmatpush1.msra.mxu0 0.0
    %155 = vmatprep.subr.mxu0 0.0
    %156 = vmatpush1.msra.mxu0 0.0
    %157 = vmatprep.subr.mxu0 0.0
    %158 = vmatpush1.msra.mxu0 0.0
    %159 = vmatprep.subr.mxu0 0.0
    %160 = vmatpush1.msra.mxu0 0.0
    %161 = vmatprep.subr.mxu0 0.0
    %162 = vmatpush1.msra.mxu0 0.0
    %163 = vmatprep.subr.mxu0 0.0
    %164 = vmatpush1.msra.mxu0 0.0
    %165 = vmatprep.subr.mxu0 0.0
    %166 = vmatpush1.msra.mxu0 0.0
    %167 = vmatprep.subr.mxu0 0.0
    %168 = vmatpush1.msra.mxu0 0.0
    %169 = vmatprep.subr.mxu0 0.0
    %170 = vmatpush1.msra.mxu0 0.0
    %171 = vmatprep.subr.mxu0 0.0
    %172 = vmatpush1.msra.mxu0 0.0
    %173 = vmatprep.mubr.f32.mxu0 0.0
    %174 = vmatmul.mubr.f32.gmra.mrb[0].mxu0 %v104
    %v175 = vpop.f32.mrb[0].mxu0
    %v176 = vadd.f32 %v101, %v175
    %v177 = vpop.f32.mrb[0].mxu0
    %178 = vmatprep.mubr.f32.mxu0 0.0
    %179 = vmatmul.mubr.f32.gmra.mrb[0].mxu0 %v107
    %v180 = vpop.f32.mrb[0].mxu0
    %v181 = vadd.f32 %v101, %v180
    %v182 = vpop.f32.mrb[0].mxu0
    %183 = vdwg.mxu0
    %185 = vrot.lane.b32.xlu0 %v176, 96
    %v186 = vpop.permute.xlu0 %185
    %vm187 = vcmask 130048
    %v188 = vsel %vm187, %v176, 0
    %v190 = vsel %vm187, %v186, 0
    %192 = vmatprep.subr.mxu0 0.0
    %193 = vmatpush1.xpose.msra.mxu0 %v190
    %194 = vmatprep.subr.mxu0 0.0
    %195 = vmatpush1.xpose.msra.mxu0 0.0
    %196 = vmatprep.subr.mxu0 0.0
    %197 = vmatpush1.xpose.msra.mxu0 0.0
    %198 = vmatprep.subr.mxu0 0.0
    %199 = vmatpush1.xpose.msra.mxu0 0.0
    %200 = vmatprep.subr.mxu0 0.0
    %201 = vmatpush1.xpose.msra.mxu0 0.0
    %202 = vmatprep.subr.mxu0 0.0
    %203 = vmatpush1.xpose.msra.mxu0 0.0
    %204 = vmatprep.subr.mxu0 0.0
    %205 = vmatpush1.xpose.msra.mxu0 0.0
    %206 = vmatprep.subr.mxu0 0.0
    %207 = vmatpush1.xpose.msra.mxu0 0.0
    %208 = vmatprep.subr.mxu0 0.0
    %209 = vmatpush1.xpose.msra.mxu0 0.0
    %210 = vmatprep.subr.mxu0 0.0
    %211 = vmatpush1.xpose.msra.mxu0 0.0
    %212 = vmatprep.subr.mxu0 0.0
    %213 = vmatpush1.xpose.msra.mxu0 0.0
    %214 = vmatprep.subr.mxu0 0.0
    %215 = vmatpush1.xpose.msra.mxu0 0.0
    %216 = vmatprep.subr.mxu0 0.0
    %217 = vmatpush1.xpose.msra.mxu0 0.0
    %218 = vmatprep.subr.mxu0 0.0
    %219 = vmatpush1.xpose.msra.mxu0 0.0
    %220 = vmatprep.subr.mxu0 0.0
    %221 = vmatpush1.xpose.msra.mxu0 0.0
    %222 = vmatprep.subr.mxu0 0.0
    %223 = vmatpush1.xpose.msra.mxu0 0.0
    %224 = vmatprep.subr.mxu0 0.0
    %225 = vmatpush1.xpose.msra.mxu0 0.0
    %226 = vmatprep.subr.mxu0 0.0
    %227 = vmatpush1.xpose.msra.mxu0 0.0
    %228 = vmatprep.subr.mxu0 0.0
    %229 = vmatpush1.xpose.msra.mxu0 0.0
    %230 = vmatprep.subr.mxu0 0.0
    %231 = vmatpush1.xpose.msra.mxu0 0.0
    %232 = vmatprep.subr.mxu0 0.0
    %233 = vmatpush1.xpose.msra.mxu0 0.0
    %234 = vmatprep.subr.mxu0 0.0
    %235 = vmatpush1.xpose.msra.mxu0 0.0
    %236 = vmatprep.subr.mxu0 0.0
    %237 = vmatpush1.xpose.msra.mxu0 0.0
    %238 = vmatprep.subr.mxu0 0.0
    %239 = vmatpush1.xpose.msra.mxu0 0.0
    %240 = vmatprep.subr.mxu0 0.0
    %241 = vmatpush1.xpose.msra.mxu0 0.0
    %242 = vmatprep.subr.mxu0 0.0
    %243 = vmatpush1.xpose.msra.mxu0 0.0
    %244 = vmatprep.subr.mxu0 0.0
    %245 = vmatpush1.xpose.msra.mxu0 0.0
    %246 = vmatprep.subr.mxu0 0.0
    %247 = vmatpush1.xpose.msra.mxu0 0.0
    %248 = vmatprep.subr.mxu0 0.0
    %249 = vmatpush1.xpose.msra.mxu0 0.0
    %250 = vmatprep.subr.mxu0 0.0
    %251 = vmatpush1.xpose.msra.mxu0 0.0
    %252 = vmatprep.subr.mxu0 0.0
    %253 = vmatpush1.xpose.msra.mxu0 0.0
    %254 = vmatprep.subr.mxu0 0.0
    %255 = vmatpush1.xpose.msra.mxu0 0.0
    %256 = vmatprep.mubr.f32.mxu0 0.0
    %257 = vmatmul.mubr.f32.gmra.mrb[0].mxu0 %v188
    %v258 = vpop.f32.mrb[0].mxu0
    %v259 = vadd.f32 0.0, %v258
    %v260 = vpop.f32.mrb[0].mxu0
    %261 = vdwg.mxu0
    %263 = vrot.lane.b32.xlu0 %v181, 96
    %v264 = vpop.permute.xlu0 %263
    %v265 = vsel %vm187, %v181, 0
    %v267 = vsel %vm187, %v264, 0
    %269 = vmatprep.subr.mxu0 0.0
    %270 = vmatpush1.xpose.msra.mxu0 %v267
    %271 = vmatprep.subr.mxu0 0.0
    %272 = vmatpush1.xpose.msra.mxu0 0.0
    %273 = vmatprep.subr.mxu0 0.0
    %274 = vmatpush1.xpose.msra.mxu0 0.0
    %275 = vmatprep.subr.mxu0 0.0
    %276 = vmatpush1.xpose.msra.mxu0 0.0
    %277 = vmatprep.subr.mxu0 0.0
    %278 = vmatpush1.xpose.msra.mxu0 0.0
    %279 = vmatprep.subr.mxu0 0.0
    %280 = vmatpush1.xpose.msra.mxu0 0.0
    %281 = vmatprep.subr.mxu0 0.0
    %282 = vmatpush1.xpose.msra.mxu0 0.0
    %283 = vmatprep.subr.mxu0 0.0
    %284 = vmatpush1.xpose.msra.mxu0 0.0
    %285 = vmatprep.subr.mxu0 0.0
    %286 = vmatpush1.xpose.msra.mxu0 0.0
    %287 = vmatprep.subr.mxu0 0.0
    %288 = vmatpush1.xpose.msra.mxu0 0.0
    %289 = vmatprep.subr.mxu0 0.0
    %290 = vmatpush1.xpose.msra.mxu0 0.0
    %291 = vmatprep.subr.mxu0 0.0
    %292 = vmatpush1.xpose.msra.mxu0 0.0
    %293 = vmatprep.subr.mxu0 0.0
    %294 = vmatpush1.xpose.msra.mxu0 0.0
    %295 = vmatprep.subr.mxu0 0.0
    %296 = vmatpush1.xpose.msra.mxu0 0.0
    %297 = vmatprep.subr.mxu0 0.0
    %298 = vmatpush1.xpose.msra.mxu0 0.0
    %299 = vmatprep.subr.mxu0 0.0
    %300 = vmatpush1.xpose.msra.mxu0 0.0
    %301 = vmatprep.subr.mxu0 0.0
    %302 = vmatpush1.xpose.msra.mxu0 0.0
    %303 = vmatprep.subr.mxu0 0.0
    %304 = vmatpush1.xpose.msra.mxu0 0.0
    %305 = vmatprep.subr.mxu0 0.0
    %306 = vmatpush1.xpose.msra.mxu0 0.0
    %307 = vmatprep.subr.mxu0 0.0
    %308 = vmatpush1.xpose.msra.mxu0 0.0
    %309 = vmatprep.subr.mxu0 0.0
    %310 = vmatpush1.xpose.msra.mxu0 0.0
    %311 = vmatprep.subr.mxu0 0.0
    %312 = vmatpush1.xpose.msra.mxu0 0.0
    %313 = vmatprep.subr.mxu0 0.0
    %314 = vmatpush1.xpose.msra.mxu0 0.0
    %315 = vmatprep.subr.mxu0 0.0
    %316 = vmatpush1.xpose.msra.mxu0 0.0
    %317 = vmatprep.subr.mxu0 0.0
    %318 = vmatpush1.xpose.msra.mxu0 0.0
    %319 = vmatprep.subr.mxu0 0.0
    %320 = vmatpush1.xpose.msra.mxu0 0.0
    %321 = vmatprep.subr.mxu0 0.0
    %322 = vmatpush1.xpose.msra.mxu0 0.0
    %323 = vmatprep.subr.mxu0 0.0
    %324 = vmatpush1.xpose.msra.mxu0 0.0
    %325 = vmatprep.subr.mxu0 0.0
    %326 = vmatpush1.xpose.msra.mxu0 0.0
    %327 = vmatprep.subr.mxu0 0.0
    %328 = vmatpush1.xpose.msra.mxu0 0.0
    %329 = vmatprep.subr.mxu0 0.0
    %330 = vmatpush1.xpose.msra.mxu0 0.0
    %331 = vmatprep.subr.mxu0 0.0
    %332 = vmatpush1.xpose.msra.mxu0 0.0
    %333 = vmatprep.mubr.f32.mxu0 0.0
    %334 = vmatmul.mubr.f32.gmra.mrb[0].mxu0 %v265
    %v335 = vpop.f32.mrb[0].mxu0
    %v336 = vadd.f32 0.0, %v335
    %v337 = vpop.f32.mrb[0].mxu0
    %338 = vdwg.mxu0
    %vm339 = vcmask 64512
    %v340 = vsel %vm339, %v259, -inf
    %341 = vmax.xlane.f32.xlu0 %v340
    %v342 = vpop.xlane.xlu0 %341
    %v343 = vsel %vm339, %v336, -inf
    %344 = vmax.xlane.f32.xlu0 %v343
    %v345 = vpop.xlane.xlu0 %344
    %v346 = vsub.f32 %v259, %v342
    %v347 = vsub.f32 %v336, %v345
    %v348 = vmul.f32 %v346, 1.442695
    %v349 = vpow.pop %v348
    %v350 = vmul.f32 %v347, 1.442695
    %v351 = vpow.pop %v350
    %v352 = vsel %vm339, %v349, 0.0
    %353 = vadd.xlane.f32.xlu0 %v352
    %v354 = vpop.xlane.xlu0 %353
    %v355 = vsel %vm339, %v351, 0.0
    %356 = vadd.xlane.f32.xlu0 %v355
    %v357 = vpop.xlane.xlu0 %356
    %v358 = vrcp.pop %v354
    %v359 = vmul.f32 %v349, %v358
    %v360 = vrcp.pop %v357
    %v361 = vmul.f32 %v351, %v360
    %362 = vst.msk [vmem:[#allocation10] sm:$0xff] %vm339, %v359
    %363 = vst.msk [vmem:[#allocation10 + $0x10] sm:$0xff] %vm339, %v361
    %364 = vrot.lane.b32.xlu0 %v176, 64
    %v365 = vpop.permute.xlu0 %364
    %v368 = vsel %vm339, %v359, 0
    %370 = vmatprep.subr.mxu0 0.0
    %371 = vmatpush1.msra.mxu0 %v365
    %372 = vmatprep.subr.mxu0 0.0
    %373 = vmatpush1.msra.mxu0 0.0
    %374 = vmatprep.subr.mxu0 0.0
    %375 = vmatpush1.msra.mxu0 0.0
    %376 = vmatprep.subr.mxu0 0.0
    %377 = vmatpush1.msra.mxu0 0.0
    %378 = vmatprep.subr.mxu0 0.0
    %379 = vmatpush1.msra.mxu0 0.0
    %380 = vmatprep.subr.mxu0 0.0
    %381 = vmatpush1.msra.mxu0 0.0
    %382 = vmatprep.subr.mxu0 0.0
    %383 = vmatpush1.msra.mxu0 0.0
    %384 = vmatprep.subr.mxu0 0.0
    %385 = vmatpush1.msra.mxu0 0.0
    %386 = vmatprep.subr.mxu0 0.0
    %387 = vmatpush1.msra.mxu0 0.0
    %388 = vmatprep.subr.mxu0 0.0
    %389 = vmatpush1.msra.mxu0 0.0
    %390 = vmatprep.subr.mxu0 0.0
    %391 = vmatpush1.msra.mxu0 0.0
    %392 = vmatprep.subr.mxu0 0.0
    %393 = vmatpush1.msra.mxu0 0.0
    %394 = vmatprep.subr.mxu0 0.0
    %395 = vmatpush1.msra.mxu0 0.0
    %396 = vmatprep.subr.mxu0 0.0
    %397 = vmatpush1.msra.mxu0 0.0
    %398 = vmatprep.subr.mxu0 0.0
    %399 = vmatpush1.msra.mxu0 0.0
    %400 = vmatprep.subr.mxu0 0.0
    %401 = vmatpush1.msra.mxu0 0.0
    %402 = vmatprep.subr.mxu0 0.0
    %403 = vmatpush1.msra.mxu0 0.0
    %404 = vmatprep.subr.mxu0 0.0
    %405 = vmatpush1.msra.mxu0 0.0
    %406 = vmatprep.subr.mxu0 0.0
    %407 = vmatpush1.msra.mxu0 0.0
    %408 = vmatprep.subr.mxu0 0.0
    %409 = vmatpush1.msra.mxu0 0.0
    %410 = vmatprep.subr.mxu0 0.0
    %411 = vmatpush1.msra.mxu0 0.0
    %412 = vmatprep.subr.mxu0 0.0
    %413 = vmatpush1.msra.mxu0 0.0
    %414 = vmatprep.subr.mxu0 0.0
    %415 = vmatpush1.msra.mxu0 0.0
    %416 = vmatprep.subr.mxu0 0.0
    %417 = vmatpush1.msra.mxu0 0.0
    %418 = vmatprep.subr.mxu0 0.0
    %419 = vmatpush1.msra.mxu0 0.0
    %420 = vmatprep.subr.mxu0 0.0
    %421 = vmatpush1.msra.mxu0 0.0
    %422 = vmatprep.subr.mxu0 0.0
    %423 = vmatpush1.msra.mxu0 0.0
    %424 = vmatprep.subr.mxu0 0.0
    %425 = vmatpush1.msra.mxu0 0.0
    %426 = vmatprep.subr.mxu0 0.0
    %427 = vmatpush1.msra.mxu0 0.0
    %428 = vmatprep.subr.mxu0 0.0
    %429 = vmatpush1.msra.mxu0 0.0
    %430 = vmatprep.subr.mxu0 0.0
    %431 = vmatpush1.msra.mxu0 0.0
    %432 = vmatprep.subr.mxu0 0.0
    %433 = vmatpush1.msra.mxu0 0.0
    %434 = vmatprep.mubr.f32.mxu0 0.0
    %435 = vmatmul.mubr.f32.gmra.mrb[0].mxu0 %v368
    %v436 = vpop.f32.mrb[0].mxu0
    %v437 = vadd.f32 0.0, %v436
    %v438 = vpop.f32.mrb[0].mxu0
    %439 = vdwg.mxu0
    %440 = vrot.lane.b32.xlu0 %v181, 64
    %v441 = vpop.permute.xlu0 %440
    %v444 = vsel %vm339, %v361, 0
    %446 = vmatprep.subr.mxu0 0.0
    %447 = vmatpush1.msra.mxu0 %v441
    %448 = vmatprep.subr.mxu0 0.0
    %449 = vmatpush1.msra.mxu0 0.0
    %450 = vmatprep.subr.mxu0 0.0
    %451 = vmatpush1.msra.mxu0 0.0
    %452 = vmatprep.subr.mxu0 0.0
    %453 = vmatpush1.msra.mxu0 0.0
    %454 = vmatprep.subr.mxu0 0.0
    %455 = vmatpush1.msra.mxu0 0.0
    %456 = vmatprep.subr.mxu0 0.0
    %457 = vmatpush1.msra.mxu0 0.0
    %458 = vmatprep.subr.mxu0 0.0
    %459 = vmatpush1.msra.mxu0 0.0
    %460 = vmatprep.subr.mxu0 0.0
    %461 = vmatpush1.msra.mxu0 0.0
    %462 = vmatprep.subr.mxu0 0.0
    %463 = vmatpush1.msra.mxu0 0.0
    %464 = vmatprep.subr.mxu0 0.0
    %465 = vmatpush1.msra.mxu0 0.0
    %466 = vmatprep.subr.mxu0 0.0
    %467 = vmatpush1.msra.mxu0 0.0
    %468 = vmatprep.subr.mxu0 0.0
    %469 = vmatpush1.msra.mxu0 0.0
    %470 = vmatprep.subr.mxu0 0.0
    %471 = vmatpush1.msra.mxu0 0.0
    %472 = vmatprep.subr.mxu0 0.0
    %473 = vmatpush1.msra.mxu0 0.0
    %474 = vmatprep.subr.mxu0 0.0
    %475 = vmatpush1.msra.mxu0 0.0
    %476 = vmatprep.subr.mxu0 0.0
    %477 = vmatpush1.msra.mxu0 0.0
    %478 = vmatprep.subr.mxu0 0.0
    %479 = vmatpush1.msra.mxu0 0.0
    %480 = vmatprep.subr.mxu0 0.0
    %481 = vmatpush1.msra.mxu0 0.0
    %482 = vmatprep.subr.mxu0 0.0
    %483 = vmatpush1.msra.mxu0 0.0
    %484 = vmatprep.subr.mxu0 0.0
    %485 = vmatpush1.msra.mxu0 0.0
    %486 = vmatprep.subr.mxu0 0.0
    %487 = vmatpush1.msra.mxu0 0.0
    %488 = vmatprep.subr.mxu0 0.0
    %489 = vmatpush1.msra.mxu0 0.0
    %490 = vmatprep.subr.mxu0 0.0
    %491 = vmatpush1.msra.mxu0 0.0
    %492 = vmatprep.subr.mxu0 0.0
    %493 = vmatpush1.msra.mxu0 0.0
    %494 = vmatprep.subr.mxu0 0.0
    %495 = vmatpush1.msra.mxu0 0.0
    %496 = vmatprep.subr.mxu0 0.0
    %497 = vmatpush1.msra.mxu0 0.0
    %498 = vmatprep.subr.mxu0 0.0
    %499 = vmatpush1.msra.mxu0 0.0
    %500 = vmatprep.subr.mxu0 0.0
    %501 = vmatpush1.msra.mxu0 0.0
    %502 = vmatprep.subr.mxu0 0.0
    %503 = vmatpush1.msra.mxu0 0.0
    %504 = vmatprep.subr.mxu0 0.0
    %505 = vmatpush1.msra.mxu0 0.0
    %506 = vmatprep.subr.mxu0 0.0
    %507 = vmatpush1.msra.mxu0 0.0
    %508 = vmatprep.subr.mxu0 0.0
    %509 = vmatpush1.msra.mxu0 0.0
    %510 = vmatprep.mubr.f32.mxu0 0.0
    %511 = vmatmul.mubr.f32.gmra.mrb[0].mxu0 %v444
    %v512 = vpop.f32.mrb[0].mxu0
    %v513 = vadd.f32 0.0, %v512
    %v514 = vpop.f32.mrb[0].mxu0
    %515 = vdwg.mxu0
    %516 = vst.msk [vmem:[#allocation2] sm:$0xff] %vm187, %v437
    %517 = vst.msk [vmem:[#allocation2 + $0x8] sm:$0xff] %vm187, %v513
    %518 = vrot.lane.b32.xlu0 %v176, 112
    %v519 = vpop.permute.xlu0 %518
    %520 = vrot.lane.b32.xlu0 %v176, 80
    %v521 = vpop.permute.xlu0 %520
    %v522 = vsel %vm187, %v519, 0
    %v524 = vsel %vm187, %v521, 0
    %526 = vmatprep.subr.mxu0 0.0
    %527 = vmatpush1.xpose.msra.mxu0 %v524
    %528 = vmatprep.subr.mxu0 0.0
    %529 = vmatpush1.xpose.msra.mxu0 0.0
    %530 = vmatprep.subr.mxu0 0.0
    %531 = vmatpush1.xpose.msra.mxu0 0.0
    %532 = vmatprep.subr.mxu0 0.0
    %533 = vmatpush1.xpose.msra.mxu0 0.0
    %534 = vmatprep.subr.mxu0 0.0
    %535 = vmatpush1.xpose.msra.mxu0 0.0
    %536 = vmatprep.subr.mxu0 0.0
    %537 = vmatpush1.xpose.msra.mxu0 0.0
    %538 = vmatprep.subr.mxu0 0.0
    %539 = vmatpush1.xpose.msra.mxu0 0.0
    %540 = vmatprep.subr.mxu0 0.0
    %541 = vmatpush1.xpose.msra.mxu0 0.0
    %542 = vmatprep.subr.mxu0 0.0
    %543 = vmatpush1.xpose.msra.mxu0 0.0
    %544 = vmatprep.subr.mxu0 0.0
    %545 = vmatpush1.xpose.msra.mxu0 0.0
    %546 = vmatprep.subr.mxu0 0.0
    %547 = vmatpush1.xpose.msra.mxu0 0.0
    %548 = vmatprep.subr.mxu0 0.0
    %549 = vmatpush1.xpose.msra.mxu0 0.0
    %550 = vmatprep.subr.mxu0 0.0
    %551 = vmatpush1.xpose.msra.mxu0 0.0
    %552 = vmatprep.subr.mxu0 0.0
    %553 = vmatpush1.xpose.msra.mxu0 0.0
    %554 = vmatprep.subr.mxu0 0.0
    %555 = vmatpush1.xpose.msra.mxu0 0.0
    %556 = vmatprep.subr.mxu0 0.0
    %557 = vmatpush1.xpose.msra.mxu0 0.0
    %558 = vmatprep.subr.mxu0 0.0
    %559 = vmatpush1.xpose.msra.mxu0 0.0
    %560 = vmatprep.subr.mxu0 0.0
    %561 = vmatpush1.xpose.msra.mxu0 0.0
    %562 = vmatprep.subr.mxu0 0.0
    %563 = vmatpush1.xpose.msra.mxu0 0.0
    %564 = vmatprep.subr.mxu0 0.0
    %565 = vmatpush1.xpose.msra.mxu0 0.0
    %566 = vmatprep.subr.mxu0 0.0
    %567 = vmatpush1.xpose.msra.mxu0 0.0
    %568 = vmatprep.subr.mxu0 0.0
    %569 = vmatpush1.xpose.msra.mxu0 0.0
    %570 = vmatprep.subr.mxu0 0.0
    %571 = vmatpush1.xpose.msra.mxu0 0.0
    %572 = vmatprep.subr.mxu0 0.0
    %573 = vmatpush1.xpose.msra.mxu0 0.0
    %574 = vmatprep.subr.mxu0 0.0
    %575 = vmatpush1.xpose.msra.mxu0 0.0
    %576 = vmatprep.subr.mxu0 0.0
    %577 = vmatpush1.xpose.msra.mxu0 0.0
    %578 = vmatprep.subr.mxu0 0.0
    %579 = vmatpush1.xpose.msra.mxu0 0.0
    %580 = vmatprep.subr.mxu0 0.0
    %581 = vmatpush1.xpose.msra.mxu0 0.0
    %582 = vmatprep.subr.mxu0 0.0
    %583 = vmatpush1.xpose.msra.mxu0 0.0
    %584 = vmatprep.subr.mxu0 0.0
    %585 = vmatpush1.xpose.msra.mxu0 0.0
    %586 = vmatprep.subr.mxu0 0.0
    %587 = vmatpush1.xpose.msra.mxu0 0.0
    %588 = vmatprep.subr.mxu0 0.0
    %589 = vmatpush1.xpose.msra.mxu0 0.0
    %590 = vmatprep.mubr.f32.mxu0 0.0
    %591 = vmatmul.mubr.f32.gmra.mrb[0].mxu0 %v522
    %v592 = vpop.f32.mrb[0].mxu0
    %v593 = vadd.f32 0.0, %v592
    %v594 = vpop.f32.mrb[0].mxu0
    %595 = vdwg.mxu0
    %596 = vrot.lane.b32.xlu0 %v181, 112
    %v597 = vpop.permute.xlu0 %596
    %598 = vrot.lane.b32.xlu0 %v181, 80
    %v599 = vpop.permute.xlu0 %598
    %v600 = vsel %vm187, %v597, 0
    %v602 = vsel %vm187, %v599, 0
    %604 = vmatprep.subr.mxu0 0.0
    %605 = vmatpush1.xpose.msra.mxu0 %v602
    %606 = vmatprep.subr.mxu0 0.0
    %607 = vmatpush1.xpose.msra.mxu0 0.0
    %608 = vmatprep.subr.mxu0 0.0
    %609 = vmatpush1.xpose.msra.mxu0 0.0
    %610 = vmatprep.subr.mxu0 0.0
    %611 = vmatpush1.xpose.msra.mxu0 0.0
    %612 = vmatprep.subr.mxu0 0.0
    %613 = vmatpush1.xpose.msra.mxu0 0.0
    %614 = vmatprep.subr.mxu0 0.0
    %615 = vmatpush1.xpose.msra.mxu0 0.0
    %616 = vmatprep.subr.mxu0 0.0
    %617 = vmatpush1.xpose.msra.mxu0 0.0
    %618 = vmatprep.subr.mxu0 0.0
    %619 = vmatpush1.xpose.msra.mxu0 0.0
    %620 = vmatprep.subr.mxu0 0.0
    %621 = vmatpush1.xpose.msra.mxu0 0.0
    %622 = vmatprep.subr.mxu0 0.0
    %623 = vmatpush1.xpose.msra.mxu0 0.0
    %624 = vmatprep.subr.mxu0 0.0
    %625 = vmatpush1.xpose.msra.mxu0 0.0
    %626 = vmatprep.subr.mxu0 0.0
    %627 = vmatpush1.xpose.msra.mxu0 0.0
    %628 = vmatprep.subr.mxu0 0.0
    %629 = vmatpush1.xpose.msra.mxu0 0.0
    %630 = vmatprep.subr.mxu0 0.0
    %631 = vmatpush1.xpose.msra.mxu0 0.0
    %632 = vmatprep.subr.mxu0 0.0
    %633 = vmatpush1.xpose.msra.mxu0 0.0
    %634 = vmatprep.subr.mxu0 0.0
    %635 = vmatpush1.xpose.msra.mxu0 0.0
    %636 = vmatprep.subr.mxu0 0.0
    %637 = vmatpush1.xpose.msra.mxu0 0.0
    %638 = vmatprep.subr.mxu0 0.0
    %639 = vmatpush1.xpose.msra.mxu0 0.0
    %640 = vmatprep.subr.mxu0 0.0
    %641 = vmatpush1.xpose.msra.mxu0 0.0
    %642 = vmatprep.subr.mxu0 0.0
    %643 = vmatpush1.xpose.msra.mxu0 0.0
    %644 = vmatprep.subr.mxu0 0.0
    %645 = vmatpush1.xpose.msra.mxu0 0.0
    %646 = vmatprep.subr.mxu0 0.0
    %647 = vmatpush1.xpose.msra.mxu0 0.0
    %648 = vmatprep.subr.mxu0 0.0
    %649 = vmatpush1.xpose.msra.mxu0 0.0
    %650 = vmatprep.subr.mxu0 0.0
    %651 = vmatpush1.xpose.msra.mxu0 0.0
    %652 = vmatprep.subr.mxu0 0.0
    %653 = vmatpush1.xpose.msra.mxu0 0.0
    %654 = vmatprep.subr.mxu0 0.0
    %655 = vmatpush1.xpose.msra.mxu0 0.0
    %656 = vmatprep.subr.mxu0 0.0
    %657 = vmatpush1.xpose.msra.mxu0 0.0
    %658 = vmatprep.subr.mxu0 0.0
    %659 = vmatpush1.xpose.msra.mxu0 0.0
    %660 = vmatprep.subr.mxu0 0.0
    %661 = vmatpush1.xpose.msra.mxu0 0.0
    %662 = vmatprep.subr.mxu0 0.0
    %663 = vmatpush1.xpose.msra.mxu0 0.0
    %664 = vmatprep.subr.mxu0 0.0
    %665 = vmatpush1.xpose.msra.mxu0 0.0
    %666 = vmatprep.subr.mxu0 0.0
    %667 = vmatpush1.xpose.msra.mxu0 0.0
    %668 = vmatprep.mubr.f32.mxu0 0.0
    %669 = vmatmul.mubr.f32.gmra.mrb[0].mxu0 %v600
    %v670 = vpop.f32.mrb[0].mxu0
    %v671 = vadd.f32 0.0, %v670
    %v672 = vpop.f32.mrb[0].mxu0
    %673 = vdwg.mxu0
    %v674 = vsel %vm339, %v593, -inf
    %675 = vmax.xlane.f32.xlu0 %v674
    %v676 = vpop.xlane.xlu0 %675
    %v677 = vsel %vm339, %v671, -inf
    %678 = vmax.xlane.f32.xlu0 %v677
    %v679 = vpop.xlane.xlu0 %678
    %v680 = vsub.f32 %v593, %v676
    %v681 = vsub.f32 %v671, %v679
    %v682 = vmul.f32 %v680, 1.442695
    %v683 = vpow.pop %v682
    %v684 = vmul.f32 %v681, 1.442695
    %v685 = vpow.pop %v684
    %v686 = vsel %vm339, %v683, 0.0
    %687 = vadd.xlane.f32.xlu0 %v686
    %v688 = vpop.xlane.xlu0 %687
    %v689 = vsel %vm339, %v685, 0.0
    %690 = vadd.xlane.f32.xlu0 %v689
    %v691 = vpop.xlane.xlu0 %690
    %v692 = vrcp.pop %v688
    %v693 = vmul.f32 %v683, %v692
    %v694 = vrcp.pop %v691
    %v695 = vmul.f32 %v685, %v694
    %s696 = scalar_lea.vmem [#allocation10], 8
    %697 = vst.msk [vmem:[%s696] sm:$0xff] %vm339, %v693
    %698 = vst.msk [vmem:[%s696 + $0x10] sm:$0xff] %vm339, %v695
    %699 = vrot.lane.b32.xlu0 %v176, 48
    %v700 = vpop.permute.xlu0 %699
    %v703 = vsel %vm339, %v693, 0
    %705 = vmatprep.subr.mxu0 0.0
    %706 = vmatpush1.msra.mxu0 %v700
    %707 = vmatprep.subr.mxu0 0.0
    %708 = vmatpush1.msra.mxu0 0.0
    %709 = vmatprep.subr.mxu0 0.0
    %710 = vmatpush1.msra.mxu0 0.0
    %711 = vmatprep.subr.mxu0 0.0
    %712 = vmatpush1.msra.mxu0 0.0
    %713 = vmatprep.subr.mxu0 0.0
    %714 = vmatpush1.msra.mxu0 0.0
    %715 = vmatprep.subr.mxu0 0.0
    %716 = vmatpush1.msra.mxu0 0.0
    %717 = vmatprep.subr.mxu0 0.0
    %718 = vmatpush1.msra.mxu0 0.0
    %719 = vmatprep.subr.mxu0 0.0
    %720 = vmatpush1.msra.mxu0 0.0
    %721 = vmatprep.subr.mxu0 0.0
    %722 = vmatpush1.msra.mxu0 0.0
    %723 = vmatprep.subr.mxu0 0.0
    %724 = vmatpush1.msra.mxu0 0.0
    %725 = vmatprep.subr.mxu0 0.0
    %726 = vmatpush1.msra.mxu0 0.0
    %727 = vmatprep.subr.mxu0 0.0
    %728 = vmatpush1.msra.mxu0 0.0
    %729 = vmatprep.subr.mxu0 0.0
    %730 = vmatpush1.msra.mxu0 0.0
    %731 = vmatprep.subr.mxu0 0.0
    %732 = vmatpush1.msra.mxu0 0.0
    %733 = vmatprep.subr.mxu0 0.0
    %734 = vmatpush1.msra.mxu0 0.0
    %735 = vmatprep.subr.mxu0 0.0
    %736 = vmatpush1.msra.mxu0 0.0
    %737 = vmatprep.subr.mxu0 0.0
    %738 = vmatpush1.msra.mxu0 0.0
    %739 = vmatprep.subr.mxu0 0.0
    %740 = vmatpush1.msra.mxu0 0.0
    %741 = vmatprep.subr.mxu0 0.0
    %742 = vmatpush1.msra.mxu0 0.0
    %743 = vmatprep.subr.mxu0 0.0
    %744 = vmatpush1.msra.mxu0 0.0
    %745 = vmatprep.subr.mxu0 0.0
    %746 = vmatpush1.msra.mxu0 0.0
    %747 = vmatprep.subr.mxu0 0.0
    %748 = vmatpush1.msra.mxu0 0.0
    %749 = vmatprep.subr.mxu0 0.0
    %750 = vmatpush1.msra.mxu0 0.0
    %751 = vmatprep.subr.mxu0 0.0
    %752 = vmatpush1.msra.mxu0 0.0
    %753 = vmatprep.subr.mxu0 0.0
    %754 = vmatpush1.msra.mxu0 0.0
    %755 = vmatprep.subr.mxu0 0.0
    %756 = vmatpush1.msra.mxu0 0.0
    %757 = vmatprep.subr.mxu0 0.0
    %758 = vmatpush1.msra.mxu0 0.0
    %759 = vmatprep.subr.mxu0 0.0
    %760 = vmatpush1.msra.mxu0 0.0
    %761 = vmatprep.subr.mxu0 0.0
    %762 = vmatpush1.msra.mxu0 0.0
    %763 = vmatprep.subr.mxu0 0.0
    %764 = vmatpush1.msra.mxu0 0.0
    %765 = vmatprep.subr.mxu0 0.0
    %766 = vmatpush1.msra.mxu0 0.0
    %767 = vmatprep.subr.mxu0 0.0
    %768 = vmatpush1.msra.mxu0 0.0
    %769 = vmatprep.mubr.f32.mxu0 0.0
    %770 = vmatmul.mubr.f32.gmra.mrb[0].mxu0 %v703
    %v771 = vpop.f32.mrb[0].mxu0
    %v772 = vadd.f32 0.0, %v771
    %v773 = vpop.f32.mrb[0].mxu0
    %774 = vdwg.mxu0
    %775 = vrot.lane.b32.xlu0 %v181, 48
    %v776 = vpop.permute.xlu0 %775
    %v779 = vsel %vm339, %v695, 0
    %781 = vmatprep.subr.mxu0 0.0
    %782 = vmatpush1.msra.mxu0 %v776
    %783 = vmatprep.subr.mxu0 0.0
    %784 = vmatpush1.msra.mxu0 0.0
    %785 = vmatprep.subr.mxu0 0.0
    %786 = vmatpush1.msra.mxu0 0.0
    %787 = vmatprep.subr.mxu0 0.0
    %788 = vmatpush1.msra.mxu0 0.0
    %789 = vmatprep.subr.mxu0 0.0
    %790 = vmatpush1.msra.mxu0 0.0
    %791 = vmatprep.subr.mxu0 0.0
    %792 = vmatpush1.msra.mxu0 0.0
    %793 = vmatprep.subr.mxu0 0.0
    %794 = vmatpush1.msra.mxu0 0.0
    %795 = vmatprep.subr.mxu0 0.0
    %796 = vmatpush1.msra.mxu0 0.0
    %797 = vmatprep.subr.mxu0 0.0
    %798 = vmatpush1.msra.mxu0 0.0
    %799 = vmatprep.subr.mxu0 0.0
    %800 = vmatpush1.msra.mxu0 0.0
    %801 = vmatprep.subr.mxu0 0.0
    %802 = vmatpush1.msra.mxu0 0.0
    %803 = vmatprep.subr.mxu0 0.0
    %804 = vmatpush1.msra.mxu0 0.0
    %805 = vmatprep.subr.mxu0 0.0
    %806 = vmatpush1.msra.mxu0 0.0
    %807 = vmatprep.subr.mxu0 0.0
    %808 = vmatpush1.msra.mxu0 0.0
    %809 = vmatprep.subr.mxu0 0.0
    %810 = vmatpush1.msra.mxu0 0.0
    %811 = vmatprep.subr.mxu0 0.0
    %812 = vmatpush1.msra.mxu0 0.0
    %813 = vmatprep.subr.mxu0 0.0
    %814 = vmatpush1.msra.mxu0 0.0
    %815 = vmatprep.subr.mxu0 0.0
    %816 = vmatpush1.msra.mxu0 0.0
    %817 = vmatprep.subr.mxu0 0.0
    %818 = vmatpush1.msra.mxu0 0.0
    %819 = vmatprep.subr.mxu0 0.0
    %820 = vmatpush1.msra.mxu0 0.0
    %821 = vmatprep.subr.mxu0 0.0
    %822 = vmatpush1.msra.mxu0 0.0
    %823 = vmatprep.subr.mxu0 0.0
    %824 = vmatpush1.msra.mxu0 0.0
    %825 = vmatprep.subr.mxu0 0.0
    %826 = vmatpush1.msra.mxu0 0.0
    %827 = vmatprep.subr.mxu0 0.0
    %828 = vmatpush1.msra.mxu0 0.0
    %829 = vmatprep.subr.mxu0 0.0
    %830 = vmatpush1.msra.mxu0 0.0
    %831 = vmatprep.subr.mxu0 0.0
    %832 = vmatpush1.msra.mxu0 0.0
    %833 = vmatprep.subr.mxu0 0.0
    %834 = vmatpush1.msra.mxu0 0.0
    %835 = vmatprep.subr.mxu0 0.0
    %836 = vmatpush1.msra.mxu0 0.0
    %837 = vmatprep.subr.mxu0 0.0
    %838 = vmatpush1.msra.mxu0 0.0
    %839 = vmatprep.subr.mxu0 0.0
    %840 = vmatpush1.msra.mxu0 0.0
    %841 = vmatprep.subr.mxu0 0.0
    %842 = vmatpush1.msra.mxu0 0.0
    %843 = vmatprep.subr.mxu0 0.0
    %844 = vmatpush1.msra.mxu0 0.0
    %845 = vmatprep.mubr.f32.mxu0 0.0
    %846 = vmatmul.mubr.f32.gmra.mrb[0].mxu0 %v779
    %v847 = vpop.f32.mrb[0].mxu0
    %v848 = vadd.f32 0.0, %v847
    %v849 = vpop.f32.mrb[0].mxu0
    %850 = vdwg.mxu0
    %853 = vrot.lane.b32.xlu0 %v772, 16
    %v854 = vpop.permute.xlu0 %853
    %855 = vrot.lane.b32.xlu0 %v848, 16
    %v856 = vpop.permute.xlu0 %855
    %vm859 = vcmask 261248
    %860 = vst.msk [vmem:[#allocation2] sm:$0xff] %vm859, %v854
    %861 = vst.msk [vmem:[#allocation2 + $0x8] sm:$0xff] %vm859, %v856
    %v862 = vld [vmem:[#allocation2] sm:$0xff]
    %v863 = vld [vmem:[#allocation2 + $0x8] sm:$0xff]
    %v864 = vld [vmem:[#allocation8] sm:$0xff]
    %v865 = vld [vmem:[#allocation8 + $0x8] sm:$0xff]
    %v866 = vld [vmem:[#allocation8 + $0x10] sm:$0xff]
    %v867 = vld [vmem:[#allocation8 + $0x18] sm:$0xff]
    %v869 = vsel %vm64, %v862, 0
    %v872 = vsel %vm64, %v863, 0
    %874 = vmatprep.subr.mxu0 0.0
    %875 = vmatpush1.msra.mxu0 %v864
    %876 = vmatprep.subr.mxu0 0.0
    %877 = vmatpush1.msra.mxu0 %v865
    %878 = vmatprep.subr.mxu0 0.0
    %879 = vmatpush1.msra.mxu0 %v866
    %880 = vmatprep.subr.mxu0 0.0
    %881 = vmatpush1.msra.mxu0 %v867
    %882 = vmatprep.subr.mxu0 0.0
    %883 = vmatpush1.msra.mxu0 0.0
    %884 = vmatprep.subr.mxu0 0.0
    %885 = vmatpush1.msra.mxu0 0.0
    %886 = vmatprep.subr.mxu0 0.0
    %887 = vmatpush1.msra.mxu0 0.0
    %888 = vmatprep.subr.mxu0 0.0
    %889 = vmatpush1.msra.mxu0 0.0
    %890 = vmatprep.subr.mxu0 0.0
    %891 = vmatpush1.msra.mxu0 0.0
    %892 = vmatprep.subr.mxu0 0.0
    %893 = vmatpush1.msra.mxu0 0.0
    %894 = vmatprep.subr.mxu0 0.0
    %895 = vmatpush1.msra.mxu0 0.0
    %896 = vmatprep.subr.mxu0 0.0
    %897 = vmatpush1.msra.mxu0 0.0
    %898 = vmatprep.subr.mxu0 0.0
    %899 = vmatpush1.msra.mxu0 0.0
    %900 = vmatprep.subr.mxu0 0.0
    %901 = vmatpush1.msra.mxu0 0.0
    %902 = vmatprep.subr.mxu0 0.0
    %903 = vmatpush1.msra.mxu0 0.0
    %904 = vmatprep.subr.mxu0 0.0
    %905 = vmatpush1.msra.mxu0 0.0
    %906 = vmatprep.subr.mxu0 0.0
    %907 = vmatpush1.msra.mxu0 0.0
    %908 = vmatprep.subr.mxu0 0.0
    %909 = vmatpush1.msra.mxu0 0.0
    %910 = vmatprep.subr.mxu0 0.0
    %911 = vmatpush1.msra.mxu0 0.0
    %912 = vmatprep.subr.mxu0 0.0
    %913 = vmatpush1.msra.mxu0 0.0
    %914 = vmatprep.subr.mxu0 0.0
    %915 = vmatpush1.msra.mxu0 0.0
    %916 = vmatprep.subr.mxu0 0.0
    %917 = vmatpush1.msra.mxu0 0.0
    %918 = vmatprep.subr.mxu0 0.0
    %919 = vmatpush1.msra.mxu0 0.0
    %920 = vmatprep.subr.mxu0 0.0
    %921 = vmatpush1.msra.mxu0 0.0
    %922 = vmatprep.subr.mxu0 0.0
    %923 = vmatpush1.msra.mxu0 0.0
    %924 = vmatprep.subr.mxu0 0.0
    %925 = vmatpush1.msra.mxu0 0.0
    %926 = vmatprep.subr.mxu0 0.0
    %927 = vmatpush1.msra.mxu0 0.0
    %928 = vmatprep.subr.mxu0 0.0
    %929 = vmatpush1.msra.mxu0 0.0
    %930 = vmatprep.subr.mxu0 0.0
    %931 = vmatpush1.msra.mxu0 0.0
    %932 = vmatprep.subr.mxu0 0.0
    %933 = vmatpush1.msra.mxu0 0.0
    %934 = vmatprep.subr.mxu0 0.0
    %935 = vmatpush1.msra.mxu0 0.0
    %936 = vmatprep.subr.mxu0 0.0
    %937 = vmatpush1.msra.mxu0 0.0
    %938 = vmatprep.mubr.f32.mxu0 0.0
    %939 = vmatmul.mubr.f32.gmra.mrb[0].mxu0 %v869
    %v940 = vpop.f32.mrb[0].mxu0
    %v941 = vadd.f32 0.0, %v940
    %v942 = vpop.f32.mrb[0].mxu0
    %943 = vmatprep.mubr.f32.mxu0 0.0
    %944 = vmatmul.mubr.f32.gmra.mrb[0].mxu0 %v872
    %v945 = vpop.f32.mrb[0].mxu0
    %v946 = vadd.f32 0.0, %v945
    %v947 = vpop.f32.mrb[0].mxu0
    %948 = vdwg.mxu0
    %949 = vst.msk [vmem:[#allocation9] sm:$0xff] %vm64, %v941
    %950 = vst.msk [vmem:[#allocation9 + $0x8] sm:$0xff] %vm64, %v946
    // Predicated region
    $region30: #{tpu_custom_call.1} parent=1 // pred_check
      _
    $region31: #{tpu_custom_call.1} parent=1 // pred_check_branch
      %952 = sbr.rel (0) target = $region33
    $region32: #{tpu_custom_call.1} parent=1 // pred_region
      %s954 = ssub.s32 256, 256
      %955 = vsyncadd [#allocation5], %s954
      %s956 = sshll.u32 [#allocation9], 4
      %s957 = int_to_ptr.vmem [resolvable:$true] %s956
      %962 = dma.vmem_to_hbm [thread:$0]  %s957, 256, %s4, [#allocation5], 128, 128, 8
    $region33: #{tpu_custom_call.1} parent=1 // pred_fallthru
      _
    // Predicated region
    $region34: #{tpu_custom_call.1} parent=1 // pred_check
      _
    $region35: #{tpu_custom_call.1} parent=1 // pred_check_branch
      %964 = sbr.rel (0) target = $region37
    $region36: #{tpu_custom_call.1} parent=1 // pred_region
      %s966 = ssub.s32 512, 512
      %967 = vsyncadd [#allocation11], %s966
      %s968 = sshll.u32 [#allocation10], 4
      %s969 = int_to_ptr.vmem [resolvable:$true] %s968
      %974 = dma.vmem_to_hbm [thread:$0]  %s969, 512, %s5, [#allocation11], 128, 128, 8
    $region37: #{tpu_custom_call.1} parent=1 // pred_fallthru
      _
    // Predicated region
    $region38: #{tpu_custom_call.1} parent=1 // pred_check
      _
    $region39: #{tpu_custom_call.1} parent=1 // pred_check_branch
      %976 = sbr.rel (0) target = $region41
    $region40: #{tpu_custom_call.1} parent=1 // pred_region
      %977 = dma.done [#allocation5], 256
    $region41: #{tpu_custom_call.1} parent=1 // pred_fallthru
      _
    // Predicated region
    $region42: #{tpu_custom_call.1} parent=1 // pred_check
      _
    $region43: #{tpu_custom_call.1} parent=1 // pred_check_branch
      %979 = sbr.rel (0) target = $region45
    $region44: #{tpu_custom_call.1} parent=1 // pred_region
      %980 = dma.done [#allocation11], 512
    $region45: #{tpu_custom_call.1} parent=1 // pred_fallthru
      _
    %981 = vsyncpa [#allocation4], 1
    %982 = vsyncpa [#allocation7], 1
    %983 = vsyncpa [#allocation5], 1
    %984 = vsyncpa [#allocation11], 1

</llo_original>
